<compile_context>
chip_gen: v6e
topology: v6e:2x2x1
jax: 0.10.0
libtpu: 0.0.40
codegen_flags: <defaults>
</compile_context>

<pallas_src>
import functools

import jax
import jax.numpy as jnp
from jax.experimental import pallas as pl
from jax.experimental.pallas import tpu as pltpu


def _round_up(n: int, m: int) -> int:
    return ((n + m - 1) // m) * m


# ----------------------------- kernel ---------------------------------------


def _make_generator_kernel(num_layers: int, gate_width: int):
    G = gate_width  # lane-aligned width of one fused (fwd|bwd) gate group, multiple of 128

    def kernel(*refs):
        # refs = [x, (W_cat, b_cat) * num_layers, W_fc, b_fc, out]
        out_ref = refs[-1]
        h = refs[0][...]  # (B, in_pad), lanes past input_size are zero
        idx = 1

        for _layer in range(num_layers):
            w = refs[idx][...]       # (in_pad, 3G): [i_f|i_b|0, g_f|g_b|0, o_f|o_b|0]
            b = refs[idx + 1][...]   # (1, 3G) = b_ih + b_hh (f-gate dropped)
            idx += 2
            z = jnp.dot(h, w, preferred_element_type=jnp.float32) + b  # (B, 3G)
            # Slices below are exact vreg-tile boundaries (G % 128 == 0): zero-cost views.
            i_g = jax.nn.sigmoid(z[:, 0 * G:1 * G])
            g_g = jnp.tanh(z[:, 1 * G:2 * G])
            o_g = jax.nn.sigmoid(z[:, 2 * G:3 * G])
            # c = f*c0 + i*g = i*g (c0 == 0);  h = o * tanh(c), already in fwd|bwd order.
            # Padded lanes: sigmoid(0) * tanh(sigmoid(0) * tanh(0)) == 0, so h pad lanes stay 0.
            h = o_g * jnp.tanh(i_g * g_g)                               # (B, G)

        out = jax.nn.sigmoid(h)
        # TODO(synk): nn.Dropout(0.5) in train mode is stochastic; eval-mode (identity)
        # semantics are used here. Training parity would need pltpu.prng_seed +
        # pltpu.prng_random_bits masking and 2x scaling.

        w = refs[idx][...]       # (G, out_pad) composed fc1@fc2@fc3, zero rows past 2H
        b = refs[idx + 1][...]   # (1, out_pad)
        out_ref[...] = (jnp.dot(out, w, preferred_element_type=jnp.float32)
                        + b).astype(out_ref.dtype)

    return kernel


# --------------------------- parameter setup --------------------------------


def init_generator_params(key, input_size, hidden_size, num_layers, output_dim):
    """Deterministic init mimicking PyTorch's U(-1/sqrt(fan), 1/sqrt(fan))."""
    H = hidden_size
    params = {"lstm": [], "fc": []}
    in_dim = input_size
    for _layer in range(num_layers):
        layer_dirs = []
        for _direction in range(2):
            key, k1, k2, k3, k4 = jax.random.split(key, 5)
            s = 1.0 / jnp.sqrt(H)
            w_ih = jax.random.uniform(k1, (4 * H, in_dim), jnp.float32, -s, s)
            w_hh = jax.random.uniform(k2, (4 * H, H), jnp.float32, -s, s)  # unused (h0 == 0)
            b_ih = jax.random.uniform(k3, (4 * H,), jnp.float32, -s, s)
            b_hh = jax.random.uniform(k4, (4 * H,), jnp.float32, -s, s)
            layer_dirs.append((w_ih, w_hh, b_ih, b_hh))
        params["lstm"].append(layer_dirs)
        in_dim = 2 * H

    fc_dims = [(2 * H, 256), (256, 128), (128, output_dim)]
    for fin, fout in fc_dims:
        key, kw, kb = jax.random.split(key, 3)
        s = 1.0 / jnp.sqrt(fin)
        w = jax.random.uniform(kw, (fout, fin), jnp.float32, -s, s)
        b = jax.random.uniform(kb, (fout,), jnp.float32, -s, s)
        params["fc"].append((w, b))
    return params


def prepare_params(params, *, input_size, hidden_size, output_dim):
    """One-time host-side repack: fuse directions, drop f gate, fold b_hh, compose FCs,
    transpose to (in, out), zero-pad every lane dimension to a multiple of 128."""
    H = hidden_size
    H2 = 2 * H
    G = _round_up(H2, 128)                 # fused fwd|bwd gate-group width, lane-aligned
    packed = {"lstm": []}

    in_dim, in_dim_pad = input_size, _round_up(input_size, 128)
    for layer_dirs in params["lstm"]:
        W = jnp.zeros((in_dim_pad, 3 * G), jnp.float32)
        b = jnp.zeros((1, 3 * G), jnp.float32)
        # PyTorch gate row order is [i, f, g, o]; keep i, g, o and drop the dead f gate.
        for gi, gate in enumerate((0, 2, 3)):
            for di, (w_ih, _w_hh, b_ih, b_hh) in enumerate(layer_dirs):   # fwd then bwd
                col = gi * G + di * H
                W = W.at[:in_dim, col:col + H].set(w_ih[gate * H:(gate + 1) * H, :].T)
                b = b.at[0, col:col + H].set(
                    b_ih[gate * H:(gate + 1) * H] + b_hh[gate * H:(gate + 1) * H])
        packed["lstm"].append((W, b))
        in_dim, in_dim_pad = H2, G          # subsequent layers consume the padded hidden

    (W1, b1), (W2, b2), (W3, b3) = params["fc"]
    Wc = W1.T @ W2.T @ W3.T                                              # (2H, out)
    bc = (b1 @ W2.T + b2) @ W3.T + b3                                    # (out,)
    out_pad = _round_up(output_dim, 128)
    W_fc = jnp.zeros((G, out_pad), jnp.float32).at[:H2, :output_dim].set(Wc)
    b_fc = jnp.zeros((1, out_pad), jnp.float32).at[0, :output_dim].set(bc)
    packed["fc"] = (W_fc, b_fc)
    return packed


# ----------------------------- wrapper ---------------------------------------


@functools.partial(jax.jit, static_argnames=("hidden_size", "num_layers", "output_dim"))
def generator_forward(x, packed, *, hidden_size, num_layers, output_dim):
    B = x.shape[0]
    x2d = x.reshape(B, -1).astype(jnp.float32)  # == x.view(len(x), 1, -1), seq_len == 1

    in_pad = packed["lstm"][0][0].shape[0]      # static (array shape)
    if x2d.shape[1] != in_pad:
        x2d = jnp.pad(x2d, ((0, 0), (0, in_pad - x2d.shape[1])))

    args = [x2d]
    for (W, b) in packed["lstm"]:
        args += [W, b]
    W_fc, b_fc = packed["fc"]
    args += [W_fc, b_fc]

    G = packed["lstm"][0][0].shape[1] // 3
    out_pad = W_fc.shape[1]

    # Advisory cost estimate so XLA schedules around this tiny call sensibly.
    flops = 0
    bytes_accessed = (x2d.size + B * out_pad) * 4
    transcendentals = 0
    for (W, b) in packed["lstm"]:
        flops += 2 * B * W.shape[0] * W.shape[1] + B * W.shape[1]
        bytes_accessed += (W.size + b.size) * 4
        transcendentals += 4 * B * G                 # sigmoid(i), tanh(g), sigmoid(o), tanh(c)
    flops += 2 * B * W_fc.shape[0] * W_fc.shape[1] + B * out_pad
    bytes_accessed += (W_fc.size + b_fc.size) * 4
    transcendentals += B * G                         # final sigmoid

    kernel = _make_generator_kernel(num_layers, G)
    out = pl.pallas_call(
        kernel,
        out_shape=jax.ShapeDtypeStruct((B, out_pad), jnp.float32),
        in_specs=[pl.BlockSpec(memory_space=pltpu.MemorySpace.VMEM)] * len(args),
        out_specs=pl.BlockSpec(memory_space=pltpu.MemorySpace.VMEM),
        cost_estimate=pl.CostEstimate(
            flops=flops, transcendentals=transcendentals, bytes_accessed=bytes_accessed),
    )(*args)
    # TODO(synk): if batch ever grows to hundreds of rows, add a batch grid with
    # dimension_semantics=("parallel",) to use both TensorCores on v7x.
    return out[:, :output_dim]


# --------------------------- pure-JAX reference ------------------------------


def generator_reference(x, params, *, hidden_size, num_layers, output_dim):
    """Faithful (unpacked) reference of the PyTorch forward for seq_len == 1, h0 = c0 = 0."""
    H = hidden_size
    h = x.reshape(x.shape[0], -1).astype(jnp.float32)
    for layer_dirs in params["lstm"]:
        dir_h = []
        for (w_ih, _w_hh, b_ih, b_hh) in layer_dirs:
            z = h @ w_ih.T + b_ih + b_hh
            i = jax.nn.sigmoid(z[:, 0 * H:1 * H])
            g = jnp.tanh(z[:, 2 * H:3 * H])
            o = jax.nn.sigmoid(z[:, 3 * H:4 * H])
            dir_h.append(o * jnp.tanh(i * g))
        h = jnp.concatenate(dir_h, axis=-1)
    out = jax.nn.sigmoid(h)
    for (w, b) in params["fc"]:
        out = out @ w.T + b
    return out


# ------------------------------- main ----------------------------------------


if __name__ == "__main__":
    input_size = 16
    hidden_size = 32
    num_layers = 2
    output_dim = 8
    batch = 2

    key = jax.random.PRNGKey(0)
    key, kx, kp = jax.random.split(key, 3)
    x = jax.random.normal(kx, (batch, input_size), jnp.float32)
    params = init_generator_params(kp, input_size, hidden_size, num_layers, output_dim)
    packed = prepare_params(params, input_size=input_size, hidden_size=hidden_size,
                            output_dim=output_dim)

    out = generator_forward(
        x, packed, hidden_size=hidden_size, num_layers=num_layers, output_dim=output_dim
    )
    out = jax.block_until_ready(out)

    ref = generator_reference(
        x, params, hidden_size=hidden_size, num_layers=num_layers, output_dim=output_dim
    )
    assert out.shape == (batch, output_dim)
    # FC composition is exact in real arithmetic; fp32 rounding differs slightly -> 1e-4 tol.
    assert jnp.allclose(out, ref, atol=1e-4, rtol=1e-4), float(jnp.max(jnp.abs(out - ref)))

    print("KERNEL_OK")
</pallas_src>

<mosaic_0001>
module attributes {stable_mosaic.version = 11 : i64} {
  func.func @kernel(%arg0: memref<2x128xf32, #tpu.memory_space<vmem>>, %arg1: memref<128x384xf32, #tpu.memory_space<vmem>>, %arg2: memref<1x384xf32, #tpu.memory_space<vmem>>, %arg3: memref<128x384xf32, #tpu.memory_space<vmem>>, %arg4: memref<1x384xf32, #tpu.memory_space<vmem>>, %arg5: memref<128x128xf32, #tpu.memory_space<vmem>>, %arg6: memref<1x128xf32, #tpu.memory_space<vmem>>, %arg7: memref<2x128xf32, #tpu.memory_space<vmem>>) attributes {dimension_semantics = [], scalar_prefetch = 0 : i64, scratch_operands = 0 : i64, tpu.core_type = #tpu.core_type<tc>} {
    %c0 = arith.constant 0 : index
    %c0_0 = arith.constant 0 : index
    %0 = vector.load %arg0[%c0, %c0_0] : memref<2x128xf32, #tpu.memory_space<vmem>>, vector<2x128xf32>
    %c0_1 = arith.constant 0 : index
    %c0_2 = arith.constant 0 : index
    %1 = vector.load %arg1[%c0_1, %c0_2] : memref<128x384xf32, #tpu.memory_space<vmem>>, vector<128x384xf32>
    %c0_3 = arith.constant 0 : index
    %c0_4 = arith.constant 0 : index
    %2 = vector.load %arg2[%c0_3, %c0_4] : memref<1x384xf32, #tpu.memory_space<vmem>>, vector<1x384xf32>
    %cst = arith.constant dense<0.000000e+00> : vector<2x384xf32>
    %3 = tpu.matmul %0, %1, %cst {dimension_numbers = #tpu.dot_dimension_numbers<[1], [0], [0], [1], [0, 0, 1, 1], [], []>} : vector<2x128xf32>, vector<128x384xf32>, vector<2x384xf32> -> vector<2x384xf32>
    %4 = vector.broadcast %2 : vector<1x384xf32> to vector<2x384xf32>
    %5 = arith.addf %3, %4 : vector<2x384xf32>
    %6 = vector.extract_strided_slice %5 {offsets = [0, 0], sizes = [2, 128], strides = [1, 1]} : vector<2x384xf32> to vector<2x128xf32>
    %7 = arith.negf %6 : vector<2x128xf32>
    %8 = math.exp %7 : vector<2x128xf32>
    %cst_5 = arith.constant 1.000000e+00 : f32
    %9 = vector.broadcast %cst_5 : f32 to vector<2x128xf32>
    %10 = arith.addf %9, %8 : vector<2x128xf32>
    %11 = arith.divf %9, %10 : vector<2x128xf32>
    %12 = vector.extract_strided_slice %5 {offsets = [0, 128], sizes = [2, 128], strides = [1, 1]} : vector<2x384xf32> to vector<2x128xf32>
    %13 = math.tanh %12 : vector<2x128xf32>
    %14 = vector.extract_strided_slice %5 {offsets = [0, 256], sizes = [2, 128], strides = [1, 1]} : vector<2x384xf32> to vector<2x128xf32>
    %15 = arith.negf %14 : vector<2x128xf32>
    %16 = math.exp %15 : vector<2x128xf32>
    %cst_6 = arith.constant 1.000000e+00 : f32
    %17 = vector.broadcast %cst_6 : f32 to vector<2x128xf32>
    %18 = arith.addf %17, %16 : vector<2x128xf32>
    %19 = arith.divf %17, %18 : vector<2x128xf32>
    %20 = arith.mulf %11, %13 : vector<2x128xf32>
    %21 = math.tanh %20 : vector<2x128xf32>
    %22 = arith.mulf %19, %21 : vector<2x128xf32>
    %c0_7 = arith.constant 0 : index
    %c0_8 = arith.constant 0 : index
    %23 = vector.load %arg3[%c0_7, %c0_8] : memref<128x384xf32, #tpu.memory_space<vmem>>, vector<128x384xf32>
    %c0_9 = arith.constant 0 : index
    %c0_10 = arith.constant 0 : index
    %24 = vector.load %arg4[%c0_9, %c0_10] : memref<1x384xf32, #tpu.memory_space<vmem>>, vector<1x384xf32>
    %cst_11 = arith.constant dense<0.000000e+00> : vector<2x384xf32>
    %25 = tpu.matmul %22, %23, %cst_11 {dimension_numbers = #tpu.dot_dimension_numbers<[1], [0], [0], [1], [0, 0, 1, 1], [], []>} : vector<2x128xf32>, vector<128x384xf32>, vector<2x384xf32> -> vector<2x384xf32>
    %26 = vector.broadcast %24 : vector<1x384xf32> to vector<2x384xf32>
    %27 = arith.addf %25, %26 : vector<2x384xf32>
    %28 = vector.extract_strided_slice %27 {offsets = [0, 0], sizes = [2, 128], strides = [1, 1]} : vector<2x384xf32> to vector<2x128xf32>
    %29 = arith.negf %28 : vector<2x128xf32>
    %30 = math.exp %29 : vector<2x128xf32>
    %cst_12 = arith.constant 1.000000e+00 : f32
    %31 = vector.broadcast %cst_12 : f32 to vector<2x128xf32>
    %32 = arith.addf %31, %30 : vector<2x128xf32>
    %33 = arith.divf %31, %32 : vector<2x128xf32>
    %34 = vector.extract_strided_slice %27 {offsets = [0, 128], sizes = [2, 128], strides = [1, 1]} : vector<2x384xf32> to vector<2x128xf32>
    %35 = math.tanh %34 : vector<2x128xf32>
    %36 = vector.extract_strided_slice %27 {offsets = [0, 256], sizes = [2, 128], strides = [1, 1]} : vector<2x384xf32> to vector<2x128xf32>
    %37 = arith.negf %36 : vector<2x128xf32>
    %38 = math.exp %37 : vector<2x128xf32>
    %cst_13 = arith.constant 1.000000e+00 : f32
    %39 = vector.broadcast %cst_13 : f32 to vector<2x128xf32>
    %40 = arith.addf %39, %38 : vector<2x128xf32>
    %41 = arith.divf %39, %40 : vector<2x128xf32>
    %42 = arith.mulf %33, %35 : vector<2x128xf32>
    %43 = math.tanh %42 : vector<2x128xf32>
    %44 = arith.mulf %41, %43 : vector<2x128xf32>
    %45 = arith.negf %44 : vector<2x128xf32>
    %46 = math.exp %45 : vector<2x128xf32>
    %cst_14 = arith.constant 1.000000e+00 : f32
    %47 = vector.broadcast %cst_14 : f32 to vector<2x128xf32>
    %48 = arith.addf %47, %46 : vector<2x128xf32>
    %49 = arith.divf %47, %48 : vector<2x128xf32>
    %c0_15 = arith.constant 0 : index
    %c0_16 = arith.constant 0 : index
    %50 = vector.load %arg5[%c0_15, %c0_16] : memref<128x128xf32, #tpu.memory_space<vmem>>, vector<128x128xf32>
    %c0_17 = arith.constant 0 : index
    %c0_18 = arith.constant 0 : index
    %51 = vector.load %arg6[%c0_17, %c0_18] : memref<1x128xf32, #tpu.memory_space<vmem>>, vector<1x128xf32>
    %cst_19 = arith.constant dense<0.000000e+00> : vector<2x128xf32>
    %52 = tpu.matmul %49, %50, %cst_19 {dimension_numbers = #tpu.dot_dimension_numbers<[1], [0], [0], [1], [0, 0, 1, 1], [], []>} : vector<2x128xf32>, vector<128x128xf32>, vector<2x128xf32> -> vector<2x128xf32>
    %53 = vector.broadcast %51 : vector<1x128xf32> to vector<2x128xf32>
    %54 = arith.addf %52, %53 : vector<2x128xf32>
    %c0_20 = arith.constant 0 : index
    %c0_21 = arith.constant 0 : index
    %55 = vector.load %arg7[%c0_20, %c0_21] : memref<2x128xf32, #tpu.memory_space<vmem>>, vector<2x128xf32>
    tpu.vector_store %arg7[%c0_20, %c0_21], %54 {strides = array<i32>} : memref<2x128xf32, #tpu.memory_space<vmem>>, vector<2x128xf32>,
    return
  }
}

</mosaic_0001>

<llo_original>
// kernel: generator_forward.1
$region0: #{generator_forward.1}
  #allocation0 [shape = 'u32[]', space=smem, size = 0x4, offset = 0x4, fixed_abs, tag = 'smem constant byte address 0x4 - core index']
  #allocation1 [shape = 'u32[144,128]{1,0:T(1,128)}', space=vmem, size = 0x12000, scoped, tag = 'internal scratch']
  %s0 = inlined_call_operand.vmem [shape: f32[2,128], index: 0, kind: input, shape index: {}]
  %s1 = inlined_call_operand.hbm [shape: f32[128,384], index: 1, kind: input, shape index: {}]
  %s2 = inlined_call_operand.vmem [shape: f32[1,384], index: 2, kind: input, shape index: {}]
  %s3 = inlined_call_operand.hbm [shape: f32[128,384], index: 3, kind: input, shape index: {}]
  %s4 = inlined_call_operand.vmem [shape: f32[1,384], index: 4, kind: input, shape index: {}]
  %s5 = inlined_call_operand.hbm [shape: f32[128,128], index: 5, kind: input, shape index: {}]
  %s6 = inlined_call_operand.vmem [shape: f32[1,128], index: 6, kind: input, shape index: {}]
  %s7 = inlined_call_operand.hbm [shape: f32[2,128], index: 7, kind: output, shape index: {}]
  %s8 = sld [smem:[#allocation0]]
  $region50: #{generator_forward.1} parent=0
    _
  %s10 = ssub.s32 1, %s8
  %s11 = scalar_select 0, %s10, %s8
  $region1: #{generator_forward.1} parent=0
    #allocation2 [shape = 'u8[196608]{0}', space=vmem, size = 0x30000, scoped, tag = 'input window, operand 1, single buffered']
    #allocation3 [shape = 's32[1]{0}', space=sflag, size = 0x4, scoped, tag = 'scoped memory for generator_forward.1']
    #allocation4 [shape = 's32[1]{0}', space=sflag, size = 0x4, scoped, tag = 'scoped memory for generator_forward.1']
    #allocation5 [shape = 'u8[196608]{0}', space=vmem, size = 0x30000, scoped, tag = 'input window, operand 3, single buffered']
    #allocation6 [shape = 's32[1]{0}', space=sflag, size = 0x4, scoped, tag = 'scoped memory for generator_forward.1']
    #allocation7 [shape = 'u8[65536]{0}', space=vmem, size = 0x10000, scoped, tag = 'input window, operand 5, single buffered']
    #allocation8 [shape = 'u8[1024]{0}', space=vmem, size = 0x400, scoped, tag = 'output window, operand 0, single buffered']
    %12 = vsyncpa [#allocation3], 0
    %13 = vsyncpa [#allocation6], 0
    %14 = vsyncpa [#allocation4], 0
    // Predicated region
    $region2: #{generator_forward.1} parent=1 // pred_check
      _
    $region3: #{generator_forward.1} parent=1 // pred_check_branch
      %16 = sbr.rel (0) target = $region5
    $region4: #{generator_forward.1} parent=1 // pred_region
      _
    $region5: #{generator_forward.1} parent=1 // pred_fallthru
      _
    // Predicated region
    $region6: #{generator_forward.1} parent=1 // pred_check
      _
    $region7: #{generator_forward.1} parent=1 // pred_check_branch
      %18 = sbr.rel (0) target = $region9
    $region8: #{generator_forward.1} parent=1 // pred_region
      %s20 = ssub.s32 6144, 6144
      %21 = vsyncadd [#allocation3], %s20
      %s22 = sshll.u32 [#allocation2], 4
      %s23 = int_to_ptr.vmem [resolvable:$true] %s22
      %28 = dma.hbm_to_vmem [thread:$0]  %s1, 6144, %s23, [#allocation3], 384, 384, 24
    $region9: #{generator_forward.1} parent=1 // pred_fallthru
      _
    // Predicated region
    $region10: #{generator_forward.1} parent=1 // pred_check
      _
    $region11: #{generator_forward.1} parent=1 // pred_check_branch
      %30 = sbr.rel (0) target = $region13
    $region12: #{generator_forward.1} parent=1 // pred_region
      _
    $region13: #{generator_forward.1} parent=1 // pred_fallthru
      _
    // Predicated region
    $region14: #{generator_forward.1} parent=1 // pred_check
      _
    $region15: #{generator_forward.1} parent=1 // pred_check_branch
      %32 = sbr.rel (0) target = $region17
    $region16: #{generator_forward.1} parent=1 // pred_region
      %s34 = ssub.s32 6144, 6144
      %35 = vsyncadd [#allocation6], %s34
      %s36 = sshll.u32 [#allocation5], 4
      %s37 = int_to_ptr.vmem [resolvable:$true] %s36
      %42 = dma.hbm_to_vmem [thread:$0]  %s3, 6144, %s37, [#allocation6], 384, 384, 24
    $region17: #{generator_forward.1} parent=1 // pred_fallthru
      _
    // Predicated region
    $region18: #{generator_forward.1} parent=1 // pred_check
      _
    $region19: #{generator_forward.1} parent=1 // pred_check_branch
      %44 = sbr.rel (0) target = $region21
    $region20: #{generator_forward.1} parent=1 // pred_region
      _
    $region21: #{generator_forward.1} parent=1 // pred_fallthru
      _
    // Predicated region
    $region22: #{generator_forward.1} parent=1 // pred_check
      _
    $region23: #{generator_forward.1} parent=1 // pred_check_branch
      %46 = sbr.rel (0) target = $region25
    $region24: #{generator_forward.1} parent=1 // pred_region
      %s48 = ssub.s32 2048, 2048
      %49 = vsyncadd [#allocation6], %s48
      %s50 = sshll.u32 [#allocation7], 4
      %s51 = int_to_ptr.vmem [resolvable:$true] %s50
      %56 = dma.hbm_to_vmem [thread:$0]  %s5, 2048, %s51, [#allocation6], 128, 128, 8
    $region25: #{generator_forward.1} parent=1 // pred_fallthru
      _
    // Predicated region
    $region26: #{generator_forward.1} parent=1 // pred_check
      _
    $region27: #{generator_forward.1} parent=1 // pred_check_branch
      %58 = sbr.rel (0) target = $region29
    $region28: #{generator_forward.1} parent=1 // pred_region
      _
    $region29: #{generator_forward.1} parent=1 // pred_fallthru
      _
    // Predicated region
    $region30: #{generator_forward.1} parent=1 // pred_check
      _
    $region31: #{generator_forward.1} parent=1 // pred_check_branch
      %60 = sbr.rel (0) target = $region33
    $region32: #{generator_forward.1} parent=1 // pred_region
      %61 = dma.done [#allocation3], 6144
    $region33: #{generator_forward.1} parent=1 // pred_fallthru
      _
    // Predicated region
    $region34: #{generator_forward.1} parent=1 // pred_check
      _
    $region35: #{generator_forward.1} parent=1 // pred_check_branch
      %63 = sbr.rel (0) target = $region37
    $region36: #{generator_forward.1} parent=1 // pred_region
      %64 = dma.done [#allocation6], 6144
    $region37: #{generator_forward.1} parent=1 // pred_fallthru
      _
    // Predicated region
    $region38: #{generator_forward.1} parent=1 // pred_check
      _
    $region39: #{generator_forward.1} parent=1 // pred_check_branch
      %66 = sbr.rel (0) target = $region41
    $region40: #{generator_forward.1} parent=1 // pred_region
      %67 = dma.done [#allocation6], 2048
    $region41: #{generator_forward.1} parent=1 // pred_fallthru
      _
    %v68 = vld [vmem:[%s0] sm:$0x3]
    %v69 = vld [vmem:[#allocation2] sm:$0xff]
    %v70 = vld [vmem:[#allocation2 + $0x8] sm:$0xff]
    %v71 = vld [vmem:[#allocation2 + $0x10] sm:$0xff]
    %v72 = vld [vmem:[#allocation2 + $0x18] sm:$0xff]
    %v73 = vld [vmem:[#allocation2 + $0x20] sm:$0xff]
    %v74 = vld [vmem:[#allocation2 + $0x28] sm:$0xff]
    %v75 = vld [vmem:[#allocation2 + $0x30] sm:$0xff]
    %v76 = vld [vmem:[#allocation2 + $0x38] sm:$0xff]
    %v77 = vld [vmem:[#allocation2 + $0x40] sm:$0xff]
    %v78 = vld [vmem:[#allocation2 + $0x48] sm:$0xff]
    %v79 = vld [vmem:[#allocation2 + $0x50] sm:$0xff]
    %v80 = vld [vmem:[#allocation2 + $0x58] sm:$0xff]
    %v81 = vld [vmem:[#allocation2 + $0x60] sm:$0xff]
    %v82 = vld [vmem:[#allocation2 + $0x68] sm:$0xff]
    %v83 = vld [vmem:[#allocation2 + $0x70] sm:$0xff]
    %v84 = vld [vmem:[#allocation2 + $0x78] sm:$0xff]
    %v85 = vld [vmem:[#allocation2 + $0x80] sm:$0xff]
    %v86 = vld [vmem:[#allocation2 + $0x88] sm:$0xff]
    %v87 = vld [vmem:[#allocation2 + $0x90] sm:$0xff]
    %v88 = vld [vmem:[#allocation2 + $0x98] sm:$0xff]
    %v89 = vld [vmem:[#allocation2 + $0xa0] sm:$0xff]
    %v90 = vld [vmem:[#allocation2 + $0xa8] sm:$0xff]
    %v91 = vld [vmem:[#allocation2 + $0xb0] sm:$0xff]
    %v92 = vld [vmem:[#allocation2 + $0xb8] sm:$0xff]
    %v93 = vld [vmem:[#allocation2 + $0xc0] sm:$0xff]
    %v94 = vld [vmem:[#allocation2 + $0xc8] sm:$0xff]
    %v95 = vld [vmem:[#allocation2 + $0xd0] sm:$0xff]
    %v96 = vld [vmem:[#allocation2 + $0xd8] sm:$0xff]
    %v97 = vld [vmem:[#allocation2 + $0xe0] sm:$0xff]
    %v98 = vld [vmem:[#allocation2 + $0xe8] sm:$0xff]
    %v99 = vld [vmem:[#allocation2 + $0xf0] sm:$0xff]
    %v100 = vld [vmem:[#allocation2 + $0xf8] sm:$0xff]
    %v101 = vld [vmem:[#allocation2 + $0x100] sm:$0xff]
    %v102 = vld [vmem:[#allocation2 + $0x108] sm:$0xff]
    %v103 = vld [vmem:[#allocation2 + $0x110] sm:$0xff]
    %v104 = vld [vmem:[#allocation2 + $0x118] sm:$0xff]
    %v105 = vld [vmem:[#allocation2 + $0x120] sm:$0xff]
    %v106 = vld [vmem:[#allocation2 + $0x128] sm:$0xff]
    %v107 = vld [vmem:[#allocation2 + $0x130] sm:$0xff]
    %v108 = vld [vmem:[#allocation2 + $0x138] sm:$0xff]
    %v109 = vld [vmem:[#allocation2 + $0x140] sm:$0xff]
    %v110 = vld [vmem:[#allocation2 + $0x148] sm:$0xff]
    %v111 = vld [vmem:[#allocation2 + $0x150] sm:$0xff]
    %v112 = vld [vmem:[#allocation2 + $0x158] sm:$0xff]
    %v113 = vld [vmem:[#allocation2 + $0x160] sm:$0xff]
    %v114 = vld [vmem:[#allocation2 + $0x168] sm:$0xff]
    %v115 = vld [vmem:[#allocation2 + $0x170] sm:$0xff]
    %v116 = vld [vmem:[#allocation2 + $0x178] sm:$0xff]
    %v117 = vld [vmem:[%s2] sm:$0x7]
    %v119 = vlaneseq
    %v120 = vshrl.u32 %v119, 7
    %v121 = vsub.s32 0, %v120
    %v122 = vrot.slane %v117, %v121
    %v123 = vlaneseq
    %v124 = vshrl.u32 %v123, 7
    %v125 = vsub.s32 1, %v124
    %v126 = vrot.slane %v117, %v125
    %v127 = vlaneseq
    %v128 = vshrl.u32 %v127, 7
    %v129 = vsub.s32 2, %v128
    %v130 = vrot.slane %v117, %v129
    %134 = vmatprep.subr.mxu0 %v115
    %135 = vmatpush1.msra.mxu0 %v114
    %136 = vmatprep.subr.mxu0 %v112
    %137 = vmatpush1.msra.mxu0 %v111
    %138 = vmatprep.subr.mxu0 %v109
    %139 = vmatpush1.msra.mxu0 %v108
    %140 = vmatprep.subr.mxu0 %v106
    %141 = vmatpush1.msra.mxu0 %v105
    %142 = vmatprep.subr.mxu0 %v103
    %143 = vmatpush1.msra.mxu0 %v102
    %144 = vmatprep.subr.mxu0 %v100
    %145 = vmatpush1.msra.mxu0 %v99
    %146 = vmatprep.subr.mxu0 %v97
    %147 = vmatpush1.msra.mxu0 %v96
    %148 = vmatprep.subr.mxu0 %v94
    %149 = vmatpush1.msra.mxu0 %v93
    %150 = vmatprep.subr.mxu0 %v91
    %151 = vmatpush1.msra.mxu0 %v90
    %152 = vmatprep.subr.mxu0 %v88
    %153 = vmatpush1.msra.mxu0 %v87
    %154 = vmatprep.subr.mxu0 %v85
    %155 = vmatpush1.msra.mxu0 %v84
    %156 = vmatprep.subr.mxu0 %v82
    %157 = vmatpush1.msra.mxu0 %v81
    %158 = vmatprep.subr.mxu0 %v79
    %159 = vmatpush1.msra.mxu0 %v78
    %160 = vmatprep.subr.mxu0 %v76
    %161 = vmatpush1.msra.mxu0 %v75
    %162 = vmatprep.subr.mxu0 %v73
    %163 = vmatpush1.msra.mxu0 %v72
    %164 = vmatprep.subr.mxu0 %v70
    %165 = vmatpush1.msra.mxu0 %v69
    %166 = vmatprep.subr.mxu0 0.0
    %167 = vmatpush2.msra.mxu0 0.0
    %168 = vmatprep.subr.mxu0 0.0
    %169 = vmatpush2.msra.mxu0 0.0
    %170 = vmatprep.subr.mxu0 0.0
    %171 = vmatpush2.msra.mxu0 0.0
    %172 = vmatprep.subr.mxu0 0.0
    %173 = vmatpush2.msra.mxu0 0.0
    %174 = vmatprep.subr.mxu0 0.0
    %175 = vmatpush2.msra.mxu0 0.0
    %176 = vmatprep.subr.mxu0 0.0
    %177 = vmatpush2.msra.mxu0 0.0
    %178 = vmatprep.subr.mxu0 0.0
    %179 = vmatpush2.msra.mxu0 0.0
    %180 = vmatprep.subr.mxu0 0.0
    %181 = vmatpush2.msra.mxu0 0.0
    %182 = vmatprep.subr.mxu0 0.0
    %183 = vmatpush2.msra.mxu0 0.0
    %184 = vmatprep.subr.mxu0 0.0
    %185 = vmatpush2.msra.mxu0 0.0
    %186 = vmatprep.subr.mxu0 0.0
    %187 = vmatpush2.msra.mxu0 0.0
    %188 = vmatprep.subr.mxu0 0.0
    %189 = vmatpush2.msra.mxu0 0.0
    %190 = vmatprep.subr.mxu0 0.0
    %191 = vmatpush2.msra.mxu0 0.0
    %192 = vmatprep.subr.mxu0 0.0
    %193 = vmatpush2.msra.mxu0 0.0
    %194 = vmatprep.subr.mxu0 0.0
    %195 = vmatpush2.msra.mxu0 0.0
    %196 = vmatprep.subr.mxu0 0.0
    %197 = vmatpush2.msra.mxu0 0.0
    %198 = vmatprep.mubr.f32.mxu0 0.0
    %199 = vmatmul.mubr.f32.gmra.mxu0 %v68
    %v200 = vpop.f32.mrf.mxu0
    %v201 = vadd.f32 %v122, %v200
    %v202 = vpop.f32.mrf.mxu0
    %v203 = vadd.f32 %v126, %v202
    %204 = vdwg.mxu0
    %205 = vmatprep.subr.mxu0 0.0
    %206 = vmatpush1.msra.mxu0 %v116
    %207 = vmatprep.subr.mxu0 0.0
    %208 = vmatpush1.msra.mxu0 %v113
    %209 = vmatprep.subr.mxu0 0.0
    %210 = vmatpush1.msra.mxu0 %v110
    %211 = vmatprep.subr.mxu0 0.0
    %212 = vmatpush1.msra.mxu0 %v107
    %213 = vmatprep.subr.mxu0 0.0
    %214 = vmatpush1.msra.mxu0 %v104
    %215 = vmatprep.subr.mxu0 0.0
    %216 = vmatpush1.msra.mxu0 %v101
    %217 = vmatprep.subr.mxu0 0.0
    %218 = vmatpush1.msra.mxu0 %v98
    %219 = vmatprep.subr.mxu0 0.0
    %220 = vmatpush1.msra.mxu0 %v95
    %221 = vmatprep.subr.mxu0 0.0
    %222 = vmatpush1.msra.mxu0 %v92
    %223 = vmatprep.subr.mxu0 0.0
    %224 = vmatpush1.msra.mxu0 %v89
    %225 = vmatprep.subr.mxu0 0.0
    %226 = vmatpush1.msra.mxu0 %v86
    %227 = vmatprep.subr.mxu0 0.0
    %228 = vmatpush1.msra.mxu0 %v83
    %229 = vmatprep.subr.mxu0 0.0
    %230 = vmatpush1.msra.mxu0 %v80
    %231 = vmatprep.subr.mxu0 0.0
    %232 = vmatpush1.msra.mxu0 %v77
    %233 = vmatprep.subr.mxu0 0.0
    %234 = vmatpush1.msra.mxu0 %v74
    %235 = vmatprep.subr.mxu0 0.0
    %236 = vmatpush1.msra.mxu0 %v71
    %237 = vmatprep.subr.mxu0 0.0
    %238 = vmatpush2.msra.mxu0 0.0
    %239 = vmatprep.subr.mxu0 0.0
    %240 = vmatpush2.msra.mxu0 0.0
    %241 = vmatprep.subr.mxu0 0.0
    %242 = vmatpush2.msra.mxu0 0.0
    %243 = vmatprep.subr.mxu0 0.0
    %244 = vmatpush2.msra.mxu0 0.0
    %245 = vmatprep.subr.mxu0 0.0
    %246 = vmatpush2.msra.mxu0 0.0
    %247 = vmatprep.subr.mxu0 0.0
    %248 = vmatpush2.msra.mxu0 0.0
    %249 = vmatprep.subr.mxu0 0.0
    %250 = vmatpush2.msra.mxu0 0.0
    %251 = vmatprep.subr.mxu0 0.0
    %252 = vmatpush2.msra.mxu0 0.0
    %253 = vmatprep.subr.mxu0 0.0
    %254 = vmatpush2.msra.mxu0 0.0
    %255 = vmatprep.subr.mxu0 0.0
    %256 = vmatpush2.msra.mxu0 0.0
    %257 = vmatprep.subr.mxu0 0.0
    %258 = vmatpush2.msra.mxu0 0.0
    %259 = vmatprep.subr.mxu0 0.0
    %260 = vmatpush2.msra.mxu0 0.0
    %261 = vmatprep.subr.mxu0 0.0
    %262 = vmatpush2.msra.mxu0 0.0
    %263 = vmatprep.subr.mxu0 0.0
    %264 = vmatpush2.msra.mxu0 0.0
    %265 = vmatprep.subr.mxu0 0.0
    %266 = vmatpush2.msra.mxu0 0.0
    %267 = vmatprep.subr.mxu0 0.0
    %268 = vmatpush2.msra.mxu0 0.0
    %269 = vmatprep.mubr.f32.mxu0 0.0
    %270 = vmatmul.mubr.f32.gmra.mxu0 %v68
    %v271 = vpop.f32.mrf.mxu0
    %v272 = vadd.f32 %v130, %v271
    %v273 = vpop.f32.mrf.mxu0
    %274 = vdwg.mxu0
    %v275 = vxor.u32 %v201, 2147483648
    %v276 = vmul.f32 %v275, 1.442695
    %v277 = vpow.pop %v276
    %v278 = vadd.f32 %v277, 1.0
    %v279 = vrcp.pop %v278
    %v280 = vmul.f32 1.0, %v279
    %v281 = vtanh.pop %v203
    %v282 = vxor.u32 %v272, 2147483648
    %v283 = vmul.f32 %v282, 1.442695
    %v284 = vpow.pop %v283
    %v285 = vadd.f32 %v284, 1.0
    %v286 = vrcp.pop %v285
    %v287 = vmul.f32 1.0, %v286
    %v288 = vmul.f32 %v280, %v281
    %v289 = vtanh.pop %v288
    %v290 = vmul.f32 %v287, %v289
    %v291 = vld [vmem:[#allocation5] sm:$0xff]
    %v292 = vld [vmem:[#allocation5 + $0x8] sm:$0xff]
    %v293 = vld [vmem:[#allocation5 + $0x10] sm:$0xff]
    %v294 = vld [vmem:[#allocation5 + $0x18] sm:$0xff]
    %v295 = vld [vmem:[#allocation5 + $0x20] sm:$0xff]
    %v296 = vld [vmem:[#allocation5 + $0x28] sm:$0xff]
    %v297 = vld [vmem:[#allocation5 + $0x30] sm:$0xff]
    %v298 = vld [vmem:[#allocation5 + $0x38] sm:$0xff]
    %v299 = vld [vmem:[#allocation5 + $0x40] sm:$0xff]
    %v300 = vld [vmem:[#allocation5 + $0x48] sm:$0xff]
    %v301 = vld [vmem:[#allocation5 + $0x50] sm:$0xff]
    %v302 = vld [vmem:[#allocation5 + $0x58] sm:$0xff]
    %v303 = vld [vmem:[#allocation5 + $0x60] sm:$0xff]
    %v304 = vld [vmem:[#allocation5 + $0x68] sm:$0xff]
    %v305 = vld [vmem:[#allocation5 + $0x70] sm:$0xff]
    %v306 = vld [vmem:[#allocation5 + $0x78] sm:$0xff]
    %v307 = vld [vmem:[#allocation5 + $0x80] sm:$0xff]
    %v308 = vld [vmem:[#allocation5 + $0x88] sm:$0xff]
    %v309 = vld [vmem:[#allocation5 + $0x90] sm:$0xff]
    %v310 = vld [vmem:[#allocation5 + $0x98] sm:$0xff]
    %v311 = vld [vmem:[#allocation5 + $0xa0] sm:$0xff]
    %v312 = vld [vmem:[#allocation5 + $0xa8] sm:$0xff]
    %v313 = vld [vmem:[#allocation5 + $0xb0] sm:$0xff]
    %v314 = vld [vmem:[#allocation5 + $0xb8] sm:$0xff]
    %v315 = vld [vmem:[#allocation5 + $0xc0] sm:$0xff]
    %v316 = vld [vmem:[#allocation5 + $0xc8] sm:$0xff]
    %v317 = vld [vmem:[#allocation5 + $0xd0] sm:$0xff]
    %v318 = vld [vmem:[#allocation5 + $0xd8] sm:$0xff]
    %v319 = vld [vmem:[#allocation5 + $0xe0] sm:$0xff]
    %v320 = vld [vmem:[#allocation5 + $0xe8] sm:$0xff]
    %v321 = vld [vmem:[#allocation5 + $0xf0] sm:$0xff]
    %v322 = vld [vmem:[#allocation5 + $0xf8] sm:$0xff]
    %v323 = vld [vmem:[#allocation5 + $0x100] sm:$0xff]
    %v324 = vld [vmem:[#allocation5 + $0x108] sm:$0xff]
    %v325 = vld [vmem:[#allocation5 + $0x110] sm:$0xff]
    %v326 = vld [vmem:[#allocation5 + $0x118] sm:$0xff]
    %v327 = vld [vmem:[#allocation5 + $0x120] sm:$0xff]
    %v328 = vld [vmem:[#allocation5 + $0x128] sm:$0xff]
    %v329 = vld [vmem:[#allocation5 + $0x130] sm:$0xff]
    %v330 = vld [vmem:[#allocation5 + $0x138] sm:$0xff]
    %v331 = vld [vmem:[#allocation5 + $0x140] sm:$0xff]
    %v332 = vld [vmem:[#allocation5 + $0x148] sm:$0xff]
    %v333 = vld [vmem:[#allocation5 + $0x150] sm:$0xff]
    %v334 = vld [vmem:[#allocation5 + $0x158] sm:$0xff]
    %v335 = vld [vmem:[#allocation5 + $0x160] sm:$0xff]
    %v336 = vld [vmem:[#allocation5 + $0x168] sm:$0xff]
    %v337 = vld [vmem:[#allocation5 + $0x170] sm:$0xff]
    %v338 = vld [vmem:[#allocation5 + $0x178] sm:$0xff]
    %v339 = vld [vmem:[%s4] sm:$0x7]
    %v341 = vlaneseq
    %v342 = vshrl.u32 %v341, 7
    %v343 = vsub.s32 0, %v342
    %v344 = vrot.slane %v339, %v343
    %v345 = vlaneseq
    %v346 = vshrl.u32 %v345, 7
    %v347 = vsub.s32 1, %v346
    %v348 = vrot.slane %v339, %v347
    %v349 = vlaneseq
    %v350 = vshrl.u32 %v349, 7
    %v351 = vsub.s32 2, %v350
    %v352 = vrot.slane %v339, %v351
    %356 = vmatprep.subr.mxu0 %v337
    %357 = vmatpush1.msra.mxu0 %v336
    %358 = vmatprep.subr.mxu0 %v334
    %359 = vmatpush1.msra.mxu0 %v333
    %360 = vmatprep.subr.mxu0 %v331
    %361 = vmatpush1.msra.mxu0 %v330
    %362 = vmatprep.subr.mxu0 %v328
    %363 = vmatpush1.msra.mxu0 %v327
    %364 = vmatprep.subr.mxu0 %v325
    %365 = vmatpush1.msra.mxu0 %v324
    %366 = vmatprep.subr.mxu0 %v322
    %367 = vmatpush1.msra.mxu0 %v321
    %368 = vmatprep.subr.mxu0 %v319
    %369 = vmatpush1.msra.mxu0 %v318
    %370 = vmatprep.subr.mxu0 %v316
    %371 = vmatpush1.msra.mxu0 %v315
    %372 = vmatprep.subr.mxu0 %v313
    %373 = vmatpush1.msra.mxu0 %v312
    %374 = vmatprep.subr.mxu0 %v310
    %375 = vmatpush1.msra.mxu0 %v309
    %376 = vmatprep.subr.mxu0 %v307
    %377 = vmatpush1.msra.mxu0 %v306
    %378 = vmatprep.subr.mxu0 %v304
    %379 = vmatpush1.msra.mxu0 %v303
    %380 = vmatprep.subr.mxu0 %v301
    %381 = vmatpush1.msra.mxu0 %v300
    %382 = vmatprep.subr.mxu0 %v298
    %383 = vmatpush1.msra.mxu0 %v297
    %384 = vmatprep.subr.mxu0 %v295
    %385 = vmatpush1.msra.mxu0 %v294
    %386 = vmatprep.subr.mxu0 %v292
    %387 = vmatpush1.msra.mxu0 %v291
    %388 = vmatprep.subr.mxu0 0.0
    %389 = vmatpush2.msra.mxu0 0.0
    %390 = vmatprep.subr.mxu0 0.0
    %391 = vmatpush2.msra.mxu0 0.0
    %392 = vmatprep.subr.mxu0 0.0
    %393 = vmatpush2.msra.mxu0 0.0
    %394 = vmatprep.subr.mxu0 0.0
    %395 = vmatpush2.msra.mxu0 0.0
    %396 = vmatprep.subr.mxu0 0.0
    %397 = vmatpush2.msra.mxu0 0.0
    %398 = vmatprep.subr.mxu0 0.0
    %399 = vmatpush2.msra.mxu0 0.0
    %400 = vmatprep.subr.mxu0 0.0
    %401 = vmatpush2.msra.mxu0 0.0
    %402 = vmatprep.subr.mxu0 0.0
    %403 = vmatpush2.msra.mxu0 0.0
    %404 = vmatprep.subr.mxu0 0.0
    %405 = vmatpush2.msra.mxu0 0.0
    %406 = vmatprep.subr.mxu0 0.0
    %407 = vmatpush2.msra.mxu0 0.0
    %408 = vmatprep.subr.mxu0 0.0
    %409 = vmatpush2.msra.mxu0 0.0
    %410 = vmatprep.subr.mxu0 0.0
    %411 = vmatpush2.msra.mxu0 0.0
    %412 = vmatprep.subr.mxu0 0.0
    %413 = vmatpush2.msra.mxu0 0.0
    %414 = vmatprep.subr.mxu0 0.0
    %415 = vmatpush2.msra.mxu0 0.0
    %416 = vmatprep.subr.mxu0 0.0
    %417 = vmatpush2.msra.mxu0 0.0
    %418 = vmatprep.subr.mxu0 0.0
    %419 = vmatpush2.msra.mxu0 0.0
    %420 = vmatprep.mubr.f32.mxu0 0.0
    %421 = vmatmul.mubr.f32.gmra.mxu0 %v290
    %v422 = vpop.f32.mrf.mxu0
    %v423 = vadd.f32 %v344, %v422
    %v424 = vpop.f32.mrf.mxu0
    %v425 = vadd.f32 %v348, %v424
    %426 = vdwg.mxu0
    %427 = vmatprep.subr.mxu0 0.0
    %428 = vmatpush1.msra.mxu0 %v338
    %429 = vmatprep.subr.mxu0 0.0
    %430 = vmatpush1.msra.mxu0 %v335
    %431 = vmatprep.subr.mxu0 0.0
    %432 = vmatpush1.msra.mxu0 %v332
    %433 = vmatprep.subr.mxu0 0.0
    %434 = vmatpush1.msra.mxu0 %v329
    %435 = vmatprep.subr.mxu0 0.0
    %436 = vmatpush1.msra.mxu0 %v326
    %437 = vmatprep.subr.mxu0 0.0
    %438 = vmatpush1.msra.mxu0 %v323
    %439 = vmatprep.subr.mxu0 0.0
    %440 = vmatpush1.msra.mxu0 %v320
    %441 = vmatprep.subr.mxu0 0.0
    %442 = vmatpush1.msra.mxu0 %v317
    %443 = vmatprep.subr.mxu0 0.0
    %444 = vmatpush1.msra.mxu0 %v314
    %445 = vmatprep.subr.mxu0 0.0
    %446 = vmatpush1.msra.mxu0 %v311
    %447 = vmatprep.subr.mxu0 0.0
    %448 = vmatpush1.msra.mxu0 %v308
    %449 = vmatprep.subr.mxu0 0.0
    %450 = vmatpush1.msra.mxu0 %v305
    %451 = vmatprep.subr.mxu0 0.0
    %452 = vmatpush1.msra.mxu0 %v302
    %453 = vmatprep.subr.mxu0 0.0
    %454 = vmatpush1.msra.mxu0 %v299
    %455 = vmatprep.subr.mxu0 0.0
    %456 = vmatpush1.msra.mxu0 %v296
    %457 = vmatprep.subr.mxu0 0.0
    %458 = vmatpush1.msra.mxu0 %v293
    %459 = vmatprep.subr.mxu0 0.0
    %460 = vmatpush2.msra.mxu0 0.0
    %461 = vmatprep.subr.mxu0 0.0
    %462 = vmatpush2.msra.mxu0 0.0
    %463 = vmatprep.subr.mxu0 0.0
    %464 = vmatpush2.msra.mxu0 0.0
    %465 = vmatprep.subr.mxu0 0.0
    %466 = vmatpush2.msra.mxu0 0.0
    %467 = vmatprep.subr.mxu0 0.0
    %468 = vmatpush2.msra.mxu0 0.0
    %469 = vmatprep.subr.mxu0 0.0
    %470 = vmatpush2.msra.mxu0 0.0
    %471 = vmatprep.subr.mxu0 0.0
    %472 = vmatpush2.msra.mxu0 0.0
    %473 = vmatprep.subr.mxu0 0.0
    %474 = vmatpush2.msra.mxu0 0.0
    %475 = vmatprep.subr.mxu0 0.0
    %476 = vmatpush2.msra.mxu0 0.0
    %477 = vmatprep.subr.mxu0 0.0
    %478 = vmatpush2.msra.mxu0 0.0
    %479 = vmatprep.subr.mxu0 0.0
    %480 = vmatpush2.msra.mxu0 0.0
    %481 = vmatprep.subr.mxu0 0.0
    %482 = vmatpush2.msra.mxu0 0.0
    %483 = vmatprep.subr.mxu0 0.0
    %484 = vmatpush2.msra.mxu0 0.0
    %485 = vmatprep.subr.mxu0 0.0
    %486 = vmatpush2.msra.mxu0 0.0
    %487 = vmatprep.subr.mxu0 0.0
    %488 = vmatpush2.msra.mxu0 0.0
    %489 = vmatprep.subr.mxu0 0.0
    %490 = vmatpush2.msra.mxu0 0.0
    %491 = vmatprep.mubr.f32.mxu0 0.0
    %492 = vmatmul.mubr.f32.gmra.mxu0 %v290
    %v493 = vpop.f32.mrf.mxu0
    %v494 = vadd.f32 %v352, %v493
    %v495 = vpop.f32.mrf.mxu0
    %496 = vdwg.mxu0
    %v497 = vxor.u32 %v423, 2147483648
    %v498 = vmul.f32 %v497, 1.442695
    %v499 = vpow.pop %v498
    %v500 = vadd.f32 %v499, 1.0
    %v501 = vrcp.pop %v500
    %v502 = vmul.f32 1.0, %v501
    %v503 = vtanh.pop %v425
    %v504 = vxor.u32 %v494, 2147483648
    %v505 = vmul.f32 %v504, 1.442695
    %v506 = vpow.pop %v505
    %v507 = vadd.f32 %v506, 1.0
    %v508 = vrcp.pop %v507
    %v509 = vmul.f32 1.0, %v508
    %v510 = vmul.f32 %v502, %v503
    %v511 = vtanh.pop %v510
    %v512 = vmul.f32 %v509, %v511
    %v513 = vxor.u32 %v512, 2147483648
    %v514 = vmul.f32 %v513, 1.442695
    %v515 = vpow.pop %v514
    %v516 = vadd.f32 %v515, 1.0
    %v517 = vrcp.pop %v516
    %v518 = vmul.f32 1.0, %v517
    %v519 = vld [vmem:[#allocation7] sm:$0xff]
    %v520 = vld [vmem:[#allocation7 + $0x8] sm:$0xff]
    %v521 = vld [vmem:[#allocation7 + $0x10] sm:$0xff]
    %v522 = vld [vmem:[#allocation7 + $0x18] sm:$0xff]
    %v523 = vld [vmem:[#allocation7 + $0x20] sm:$0xff]
    %v524 = vld [vmem:[#allocation7 + $0x28] sm:$0xff]
    %v525 = vld [vmem:[#allocation7 + $0x30] sm:$0xff]
    %v526 = vld [vmem:[#allocation7 + $0x38] sm:$0xff]
    %v527 = vld [vmem:[#allocation7 + $0x40] sm:$0xff]
    %v528 = vld [vmem:[#allocation7 + $0x48] sm:$0xff]
    %v529 = vld [vmem:[#allocation7 + $0x50] sm:$0xff]
    %v530 = vld [vmem:[#allocation7 + $0x58] sm:$0xff]
    %v531 = vld [vmem:[#allocation7 + $0x60] sm:$0xff]
    %v532 = vld [vmem:[#allocation7 + $0x68] sm:$0xff]
    %v533 = vld [vmem:[#allocation7 + $0x70] sm:$0xff]
    %v534 = vld [vmem:[#allocation7 + $0x78] sm:$0xff]
    %v535 = vld [vmem:[%s6] sm:$0x1]
    %v537 = vlaneseq
    %v538 = vshrl.u32 %v537, 7
    %v539 = vsub.s32 0, %v538
    %v540 = vrot.slane %v535, %v539
    %542 = vmatprep.subr.mxu0 0.0
    %543 = vmatpush1.msra.mxu0 %v534
    %544 = vmatprep.subr.mxu0 0.0
    %545 = vmatpush1.msra.mxu0 %v533
    %546 = vmatprep.subr.mxu0 0.0
    %547 = vmatpush1.msra.mxu0 %v532
    %548 = vmatprep.subr.mxu0 0.0
    %549 = vmatpush1.msra.mxu0 %v531
    %550 = vmatprep.subr.mxu0 0.0
    %551 = vmatpush1.msra.mxu0 %v530
    %552 = vmatprep.subr.mxu0 0.0
    %553 = vmatpush1.msra.mxu0 %v529
    %554 = vmatprep.subr.mxu0 0.0
    %555 = vmatpush1.msra.mxu0 %v528
    %556 = vmatprep.subr.mxu0 0.0
    %557 = vmatpush1.msra.mxu0 %v527
    %558 = vmatprep.subr.mxu0 0.0
    %559 = vmatpush1.msra.mxu0 %v526
    %560 = vmatprep.subr.mxu0 0.0
    %561 = vmatpush1.msra.mxu0 %v525
    %562 = vmatprep.subr.mxu0 0.0
    %563 = vmatpush1.msra.mxu0 %v524
    %564 = vmatprep.subr.mxu0 0.0
    %565 = vmatpush1.msra.mxu0 %v523
    %566 = vmatprep.subr.mxu0 0.0
    %567 = vmatpush1.msra.mxu0 %v522
    %568 = vmatprep.subr.mxu0 0.0
    %569 = vmatpush1.msra.mxu0 %v521
    %570 = vmatprep.subr.mxu0 0.0
    %571 = vmatpush1.msra.mxu0 %v520
    %572 = vmatprep.subr.mxu0 0.0
    %573 = vmatpush1.msra.mxu0 %v519
    %574 = vmatprep.subr.mxu0 0.0
    %575 = vmatpush2.msra.mxu0 0.0
    %576 = vmatprep.subr.mxu0 0.0
    %577 = vmatpush2.msra.mxu0 0.0
    %578 = vmatprep.subr.mxu0 0.0
    %579 = vmatpush2.msra.mxu0 0.0
    %580 = vmatprep.subr.mxu0 0.0
    %581 = vmatpush2.msra.mxu0 0.0
    %582 = vmatprep.subr.mxu0 0.0
    %583 = vmatpush2.msra.mxu0 0.0
    %584 = vmatprep.subr.mxu0 0.0
    %585 = vmatpush2.msra.mxu0 0.0
    %586 = vmatprep.subr.mxu0 0.0
    %587 = vmatpush2.msra.mxu0 0.0
    %588 = vmatprep.subr.mxu0 0.0
    %589 = vmatpush2.msra.mxu0 0.0
    %590 = vmatprep.subr.mxu0 0.0
    %591 = vmatpush2.msra.mxu0 0.0
    %592 = vmatprep.subr.mxu0 0.0
    %593 = vmatpush2.msra.mxu0 0.0
    %594 = vmatprep.subr.mxu0 0.0
    %595 = vmatpush2.msra.mxu0 0.0
    %596 = vmatprep.subr.mxu0 0.0
    %597 = vmatpush2.msra.mxu0 0.0
    %598 = vmatprep.subr.mxu0 0.0
    %599 = vmatpush2.msra.mxu0 0.0
    %600 = vmatprep.subr.mxu0 0.0
    %601 = vmatpush2.msra.mxu0 0.0
    %602 = vmatprep.subr.mxu0 0.0
    %603 = vmatpush2.msra.mxu0 0.0
    %604 = vmatprep.subr.mxu0 0.0
    %605 = vmatpush2.msra.mxu0 0.0
    %606 = vmatprep.mubr.f32.mxu0 0.0
    %607 = vmatmul.mubr.f32.gmra.mxu0 %v518
    %v608 = vpop.f32.mrf.mxu0
    %v609 = vadd.f32 %v540, %v608
    %v610 = vpop.f32.mrf.mxu0
    %611 = vdwg.mxu0
    %612 = vst [vmem:[#allocation8] sm:$0x3] %v609
    // Predicated region
    $region42: #{generator_forward.1} parent=1 // pred_check
      _
    $region43: #{generator_forward.1} parent=1 // pred_check_branch
      %614 = sbr.rel (0) target = $region45
    $region44: #{generator_forward.1} parent=1 // pred_region
      %s616 = ssub.s32 32, 32
      %617 = vsyncadd [#allocation4], %s616
      %s619 = sshll.u32 [#allocation8], 4
      %s620 = int_to_ptr.vmem [resolvable:$true] %s619
      %622 = dma.vmem_to_hbm [thread:$0]  %s620, 32, %s7, [#allocation4]
    $region45: #{generator_forward.1} parent=1 // pred_fallthru
      _
    // Predicated region
    $region46: #{generator_forward.1} parent=1 // pred_check
      _
    $region47: #{generator_forward.1} parent=1 // pred_check_branch
      %624 = sbr.rel (0) target = $region49
    $region48: #{generator_forward.1} parent=1 // pred_region
      %625 = dma.done [#allocation4], 32
    $region49: #{generator_forward.1} parent=1 // pred_fallthru
      _
    %626 = vsyncpa [#allocation3], 1
    %627 = vsyncpa [#allocation6], 1
    %628 = vsyncpa [#allocation4], 1

</llo_original>
